<compile_context>
chip_gen: v5e
topology: v5e:2x2
jax: 0.10.0
libtpu: 0.0.40
codegen_flags: <defaults>
</compile_context>

<pallas_src>
import functools

import jax
import jax.numpy as jnp
from jax import lax
from jax.experimental import pallas as pl
from jax.experimental.pallas import tpu as pltpu

_LANE = 128


def _round_up(n, m):
    return ((n + m - 1) // m) * m


def _sublane_multiple(dtype):
    itemsize = jnp.dtype(dtype).itemsize
    return {4: 8, 2: 16, 1: 32}.get(itemsize, 8)


def _vmem_capacity_bytes():
    # Generation-aware VMEM capacity; fall back to the smallest (v7x, 64 MiB)
    # if the query is unavailable so the config is always safe.
    try:
        return int(pltpu.get_tpu_info().vmem_capacity_bytes)
    except Exception:
        return 64 * 2**20


def _gating_kernel(x_ref, w_ref, b_ref, weights_ref, idx_ref, *, top_k):
    # Router projection on the MXU (f32 accumulation), then iterative top-k
    # peeling + masked softmax on the VPU/XLU. Padded expert lanes carry a
    # -inf bias so they are never selected and softmax to exactly 0.
    x = x_ref[...]                          # (TM, D)   f32 or bf16
    w = w_ref[...]                          # (D, Ep)   f32 or bf16
    b = b_ref[...]                          # (1, Ep)   f32 (-inf in pad lanes)

    logits = jnp.dot(x, w, preferred_element_type=jnp.float32) + b   # (TM, Ep)

    tm, e_pad = logits.shape
    neg_inf = jnp.float32(-jnp.inf)
    col_ids = lax.broadcasted_iota(jnp.int32, logits.shape, 1)        # (TM, Ep)

    selected = jnp.zeros(logits.shape, jnp.bool_)   # accumulated top-k mask
    work = logits                                   # working copy for peeling

    idx_pad = idx_ref.shape[-1]
    idx_out = jnp.zeros((tm, idx_pad), jnp.int32)
    out_lane = lax.broadcasted_iota(jnp.int32, (tm, idx_pad), 1)

    for k in range(top_k):
        m = jnp.max(work, axis=-1, keepdims=True)                     # (TM, 1)
        is_max = work == m
        # first (lowest-index) occurrence of the max, matching lax.top_k ties
        idx = jnp.min(jnp.where(is_max, col_ids, e_pad), axis=-1, keepdims=True)
        sel = col_ids == idx
        selected = jnp.logical_or(selected, sel)
        work = jnp.where(sel, neg_inf, work)
        idx_out = jnp.where(out_lane == k, idx, idx_out)

    # softmax over the selected logits (non-top-k / padded entries -> 0)
    masked = jnp.where(selected, logits, neg_inf)
    mx = jnp.max(masked, axis=-1, keepdims=True)
    ex = jnp.where(selected, jnp.exp(masked - mx), 0.0)
    denom = jnp.sum(ex, axis=-1, keepdims=True)
    weights_ref[...] = (ex * pl.reciprocal(denom, approx=True)).astype(weights_ref.dtype)
    idx_ref[...] = idx_out


def gating_function(x, w, b, *, top_k, tile_m=None, weights_dtype=jnp.float32):
    """Mixtral router gate.

    x: (N, d_model) f32/bf16, w: (d_model, E) f32/bf16, b: (E,) f32-castable.
    Returns (weights (N, E) weights_dtype, indices (N, top_k) int32).
    """
    N, D = x.shape
    E = w.shape[1]
    assert w.shape[0] == D and b.shape == (E,)
    assert 1 <= top_k <= E and top_k <= _LANE

    sub = _sublane_multiple(x.dtype)
    vmem_cap = _vmem_capacity_bytes()

    # Token tile: large by default (1024 on 128-MiB-VMEM v5e/v6e, 512 on v7x),
    # clamped to the (sublane-aligned) token count, and clamped again so the
    # parallel grid has >= 2 steps whenever possible (v7x has 2 TensorCores).
    if tile_m is None:
        tile_m = 1024 if vmem_cap >= 100 * 2**20 else 512
    tile_m = min(tile_m, _round_up(N, sub))
    if N > sub:
        tile_m = min(tile_m, _round_up(pl.cdiv(N, 2), sub))
    tile_m = max(sub, (tile_m // sub) * sub)
    grid_m = pl.cdiv(N, tile_m)

    # Lane-dense output widths (pads sliced off after the kernel).
    e_pad = _round_up(E, _LANE)
    idx_pad_w = _LANE

    # Expert-axis padding of the (small, resident) weight/bias only. The big
    # HBM-bound x stream is NOT padded or copied.
    if e_pad != E:
        w = jnp.pad(w, ((0, 0), (0, e_pad - E)))
        b_full = jnp.concatenate(
            [b.astype(jnp.float32),
             jnp.full((e_pad - E,), -jnp.inf, jnp.float32)])
    else:
        b_full = b.astype(jnp.float32)
    b2 = b_full.reshape(1, e_pad)

    # Scoped-VMEM budget: double-buffered x tile + resident w/b + double-
    # buffered outputs, with headroom, capped at 80% of physical VMEM so the
    # same code is safe on v7x (64 MiB) and generous on v5e/v6e (128 MiB).
    x_itm = jnp.dtype(x.dtype).itemsize
    w_itm = jnp.dtype(w.dtype).itemsize
    o_itm = jnp.dtype(weights_dtype).itemsize
    needed = (2 * tile_m * D * x_itm
              + D * e_pad * w_itm
              + e_pad * 4
              + 2 * tile_m * e_pad * o_itm
              + 2 * tile_m * idx_pad_w * 4)
    vmem_limit = int(min(int(0.8 * vmem_cap),
                         max(int(needed * 1.5), 32 * 2**20)))

    kernel = functools.partial(_gating_kernel, top_k=top_k)
    weights_p, idx_p = pl.pallas_call(
        kernel,
        out_shape=(
            jax.ShapeDtypeStruct((N, e_pad), weights_dtype),
            jax.ShapeDtypeStruct((N, idx_pad_w), jnp.int32),
        ),
        grid_spec=pltpu.PrefetchScalarGridSpec(
            num_scalar_prefetch=0,
            grid=(grid_m,),
            in_specs=[
                pl.BlockSpec((tile_m, D), lambda i: (i, 0)),   # streamed tokens
                pl.BlockSpec((D, e_pad), lambda i: (0, 0)),    # resident weight
                pl.BlockSpec((1, e_pad), lambda i: (0, 0)),    # resident bias
            ],
            out_specs=[
                pl.BlockSpec((tile_m, e_pad), lambda i: (i, 0)),
                pl.BlockSpec((tile_m, idx_pad_w), lambda i: (i, 0)),
            ],
        ),
        compiler_params=pltpu.CompilerParams(
            dimension_semantics=("parallel",),
            vmem_limit_bytes=vmem_limit),
    )(x, w, b2)

    return weights_p[:, :E], idx_p[:, :top_k]


def gating_reference(x, w, b, *, top_k):
    logits = x.astype(jnp.float32) @ w.astype(jnp.float32) + b.astype(jnp.float32)[None, :]
    _, idx = lax.top_k(logits, top_k)
    one_hot = jnp.sum(jax.nn.one_hot(idx, logits.shape[-1], dtype=jnp.int32), axis=1) > 0
    masked = jnp.where(one_hot, logits, -jnp.inf)
    weights = jax.nn.softmax(masked, axis=-1)
    return weights, idx


if __name__ == "__main__":
    # Small shapes consistent with the module: batch=2, seq=8, d_model=32,
    # num_experts=8, top_k=2. Tokens are flattened to N = 16.
    batch, seq, d_model = 2, 8, 32
    num_experts, top_k = 8, 2
    N = batch * seq

    key = jax.random.PRNGKey(0)
    kx, kw, kb = jax.random.split(key, 3)

    x = jax.random.normal(kx, (N, d_model), dtype=jnp.float32)
    # nn.Linear-style init: U(-1/sqrt(d_model), 1/sqrt(d_model))
    bound = 1.0 / (d_model ** 0.5)
    w = jax.random.uniform(kw, (d_model, num_experts), jnp.float32, -bound, bound)
    b = jax.random.uniform(kb, (num_experts,), jnp.float32, -bound, bound)

    weights, indices = gating_function(x, w, b, top_k=top_k)
    jax.block_until_ready((weights, indices))

    ref_w, ref_i = gating_reference(x, w, b, top_k=top_k)
    assert weights.shape == (N, num_experts) and indices.shape == (N, top_k)
    assert jnp.allclose(weights, ref_w, atol=2e-3, rtol=2e-3), "weights mismatch"
    assert jnp.array_equal(indices, ref_i.astype(jnp.int32)), "indices mismatch"

    # Ragged token count + multi-step grid (no wrapper-side padding of x).
    x_r = x[:13]
    w_r, i_r = gating_function(x_r, w, b, top_k=top_k, tile_m=8)
    jax.block_until_ready((w_r, i_r))
    rw_r, ri_r = gating_reference(x_r, w, b, top_k=top_k)
    assert w_r.shape == (13, num_experts) and i_r.shape == (13, top_k)
    assert jnp.allclose(w_r, rw_r, atol=2e-3, rtol=2e-3), "ragged weights mismatch"
    assert jnp.array_equal(i_r, ri_r.astype(jnp.int32)), "ragged indices mismatch"

    # bf16 streaming fast path (half the HBM bytes on the dominant x stream).
    # Indices can legitimately differ from an f32 reference at near-ties, so
    # only structural sanity is asserted here.
    wt_bf, id_bf = gating_function(x.astype(jnp.bfloat16), w.astype(jnp.bfloat16),
                                   b, top_k=top_k, weights_dtype=jnp.bfloat16)
    jax.block_until_ready((wt_bf, id_bf))
    row_sums = jnp.sum(wt_bf.astype(jnp.float32), axis=-1)
    assert jnp.allclose(row_sums, 1.0, atol=2e-2), "bf16 softmax rows must sum to 1"
    assert bool(jnp.all((id_bf >= 0) & (id_bf < num_experts))), "bf16 indices out of range"
    nonzero_per_row = jnp.sum(wt_bf.astype(jnp.float32) > 0, axis=-1)
    assert bool(jnp.all(nonzero_per_row == top_k)), "bf16 top-k count mismatch"

    print("KERNEL_OK")
</pallas_src>

<mosaic_0001>
module attributes {stable_mosaic.version = 11 : i64} {
  func.func @_gating_kernel(%arg0: i32, %arg1: memref<8x32xf32, #tpu.memory_space<vmem>>, %arg2: memref<32x128xf32, #tpu.memory_space<vmem>>, %arg3: memref<1x128xf32, #tpu.memory_space<vmem>>, %arg4: memref<8x128xf32, #tpu.memory_space<vmem>>, %arg5: memref<8x128xi32, #tpu.memory_space<vmem>>) attributes {dimension_semantics = [#tpu.dimension_semantics<parallel>], iteration_bounds = array<i64: 2>, scalar_prefetch = 0 : i64, scratch_operands = 0 : i64, tpu.core_type = #tpu.core_type<tc>, window_params = [{transform_indices = @transform_0, window_bounds = array<i64: 8, 32>}, {pipeline_mode = #tpu.pipeline_mode<synchronous>, transform_indices = @transform_1, window_bounds = array<i64: 32, 128>}, {pipeline_mode = #tpu.pipeline_mode<synchronous>, transform_indices = @transform_2, window_bounds = array<i64: 1, 128>}, {transform_indices = @transform_3, window_bounds = array<i64: 8, 128>}, {transform_indices = @transform_4, window_bounds = array<i64: 8, 128>}]} {
    %c0 = arith.constant 0 : index
    %c0_0 = arith.constant 0 : index
    %0 = vector.load %arg1[%c0, %c0_0] : memref<8x32xf32, #tpu.memory_space<vmem>>, vector<8x32xf32>
    %c0_1 = arith.constant 0 : index
    %c0_2 = arith.constant 0 : index
    %1 = vector.load %arg2[%c0_1, %c0_2] : memref<32x128xf32, #tpu.memory_space<vmem>>, vector<32x128xf32>
    %c0_3 = arith.constant 0 : index
    %c0_4 = arith.constant 0 : index
    %2 = vector.load %arg3[%c0_3, %c0_4] : memref<1x128xf32, #tpu.memory_space<vmem>>, vector<1x128xf32>
    %cst = arith.constant dense<0.000000e+00> : vector<8x128xf32>
    %3 = tpu.matmul %0, %1, %cst {dimension_numbers = #tpu.dot_dimension_numbers<[1], [0], [0], [1], [0, 0, 1, 1], [], []>} : vector<8x32xf32>, vector<32x128xf32>, vector<8x128xf32> -> vector<8x128xf32>
    %4 = vector.broadcast %2 : vector<1x128xf32> to vector<8x128xf32>
    %5 = arith.addf %3, %4 : vector<8x128xf32>
    %6 = tpu.iota {dimensions = array<i32: 1>} : vector<8x128xi32>
    %false = arith.constant false
    %7 = vector.broadcast %false : i1 to vector<8x128xi1>
    %c0_i32 = arith.constant 0 : i32
    %8 = vector.broadcast %c0_i32 : i32 to vector<8x128xi32>
    %9 = tpu.iota {dimensions = array<i32: 1>} : vector<8x128xi32>
    %cst_5 = arith.constant dense<0xFF800000> : vector<8xf32>
    %10 = vector.multi_reduction <maximumf>, %5, %cst_5 [1] : vector<8x128xf32> to vector<8xf32>
    %11 = vector.shape_cast %10 : vector<8xf32> to vector<8x1xf32>
    %12 = vector.broadcast %11 : vector<8x1xf32> to vector<8x128xf32>
    %13 = arith.cmpf oeq, %5, %12 : vector<8x128xf32>
    %c128_i32 = arith.constant 128 : i32
    %14 = vector.broadcast %c128_i32 : i32 to vector<8x128xi32>
    %15 = arith.select %13, %6, %14 : vector<8x128xi1>, vector<8x128xi32>
    %cst_6 = arith.constant dense<2147483647> : vector<8xi32>
    %16 = vector.multi_reduction <minsi>, %15, %cst_6 [1] : vector<8x128xi32> to vector<8xi32>
    %17 = vector.shape_cast %16 : vector<8xi32> to vector<8x1xi32>
    %18 = vector.broadcast %17 : vector<8x1xi32> to vector<8x128xi32>
    %19 = arith.cmpi eq, %6, %18 : vector<8x128xi32>
    %20 = arith.ori %7, %19 : vector<8x128xi1>
    %cst_7 = arith.constant 0xFF800000 : f32
    %21 = vector.broadcast %cst_7 : f32 to vector<8x128xf32>
    %22 = arith.select %19, %21, %5 : vector<8x128xi1>, vector<8x128xf32>
    %c0_i32_8 = arith.constant 0 : i32
    %23 = vector.broadcast %c0_i32_8 : i32 to vector<8x128xi32>
    %24 = arith.cmpi eq, %9, %23 : vector<8x128xi32>
    %25 = vector.shape_cast %17 : vector<8x1xi32> to vector<8x1xi32>
    %26 = vector.broadcast %25 : vector<8x1xi32> to vector<8x128xi32>
    %27 = arith.select %24, %26, %8 : vector<8x128xi1>, vector<8x128xi32>
    %cst_9 = arith.constant dense<0xFF800000> : vector<8xf32>
    %28 = vector.multi_reduction <maximumf>, %22, %cst_9 [1] : vector<8x128xf32> to vector<8xf32>
    %29 = vector.shape_cast %28 : vector<8xf32> to vector<8x1xf32>
    %30 = vector.broadcast %29 : vector<8x1xf32> to vector<8x128xf32>
    %31 = arith.cmpf oeq, %22, %30 : vector<8x128xf32>
    %c128_i32_10 = arith.constant 128 : i32
    %32 = vector.broadcast %c128_i32_10 : i32 to vector<8x128xi32>
    %33 = arith.select %31, %6, %32 : vector<8x128xi1>, vector<8x128xi32>
    %cst_11 = arith.constant dense<2147483647> : vector<8xi32>
    %34 = vector.multi_reduction <minsi>, %33, %cst_11 [1] : vector<8x128xi32> to vector<8xi32>
    %35 = vector.shape_cast %34 : vector<8xi32> to vector<8x1xi32>
    %36 = vector.broadcast %35 : vector<8x1xi32> to vector<8x128xi32>
    %37 = arith.cmpi eq, %6, %36 : vector<8x128xi32>
    %38 = arith.ori %20, %37 : vector<8x128xi1>
    %c1_i32 = arith.constant 1 : i32
    %39 = vector.broadcast %c1_i32 : i32 to vector<8x128xi32>
    %40 = arith.cmpi eq, %9, %39 : vector<8x128xi32>
    %41 = vector.shape_cast %35 : vector<8x1xi32> to vector<8x1xi32>
    %42 = vector.broadcast %41 : vector<8x1xi32> to vector<8x128xi32>
    %43 = arith.select %40, %42, %27 : vector<8x128xi1>, vector<8x128xi32>
    %cst_12 = arith.constant 0xFF800000 : f32
    %44 = vector.broadcast %cst_12 : f32 to vector<8x128xf32>
    %45 = arith.select %38, %5, %44 : vector<8x128xi1>, vector<8x128xf32>
    %cst_13 = arith.constant dense<0xFF800000> : vector<8xf32>
    %46 = vector.multi_reduction <maximumf>, %45, %cst_13 [1] : vector<8x128xf32> to vector<8xf32>
    %47 = vector.shape_cast %46 : vector<8xf32> to vector<8x1xf32>
    %48 = vector.broadcast %47 : vector<8x1xf32> to vector<8x128xf32>
    %49 = arith.subf %45, %48 : vector<8x128xf32>
    %50 = math.exp %49 : vector<8x128xf32>
    %cst_14 = arith.constant 0.000000e+00 : f32
    %51 = vector.broadcast %cst_14 : f32 to vector<8x128xf32>
    %52 = arith.select %38, %50, %51 : vector<8x128xi1>, vector<8x128xf32>
    %cst_15 = arith.constant dense<0.000000e+00> : vector<8xf32>
    %53 = vector.multi_reduction <add>, %52, %cst_15 [1] : vector<8x128xf32> to vector<8xf32>
    %54 = vector.shape_cast %53 : vector<8xf32> to vector<8x1xf32>
    %55 = tpu.reciprocal %54 {approx = true} : vector<8x1xf32> -> vector<8x1xf32>
    %56 = vector.broadcast %55 : vector<8x1xf32> to vector<8x128xf32>
    %57 = arith.mulf %52, %56 : vector<8x128xf32>
    %c0_16 = arith.constant 0 : index
    %c0_17 = arith.constant 0 : index
    %58 = vector.load %arg4[%c0_16, %c0_17] : memref<8x128xf32, #tpu.memory_space<vmem>>, vector<8x128xf32>
    tpu.vector_store %arg4[%c0_16, %c0_17], %57 {strides = array<i32>} : memref<8x128xf32, #tpu.memory_space<vmem>>, vector<8x128xf32>,
    %c0_18 = arith.constant 0 : index
    %c0_19 = arith.constant 0 : index
    %59 = vector.load %arg5[%c0_18, %c0_19] : memref<8x128xi32, #tpu.memory_space<vmem>>, vector<8x128xi32>
    tpu.vector_store %arg5[%c0_18, %c0_19], %43 {strides = array<i32>} : memref<8x128xi32, #tpu.memory_space<vmem>>, vector<8x128xi32>,
    return
  }
  func.func @transform_0(%arg0: i32) -> (i32, i32) {
    %c0_i32 = arith.constant 0 : i32
    %c0_i32_0 = arith.constant 0 : i32
    return %arg0, %c0_i32 : i32, i32
  }
  func.func @transform_1(%arg0: i32) -> (i32, i32) {
    %c0_i32 = arith.constant 0 : i32
    %c0_i32_0 = arith.constant 0 : i32
    %c0_i32_1 = arith.constant 0 : i32
    return %c0_i32, %c0_i32_0 : i32, i32
  }
  func.func @transform_2(%arg0: i32) -> (i32, i32) {
    %c0_i32 = arith.constant 0 : i32
    %c0_i32_0 = arith.constant 0 : i32
    %c0_i32_1 = arith.constant 0 : i32
    return %c0_i32, %c0_i32_0 : i32, i32
  }
  func.func @transform_3(%arg0: i32) -> (i32, i32) {
    %c0_i32 = arith.constant 0 : i32
    %c0_i32_0 = arith.constant 0 : i32
    return %arg0, %c0_i32 : i32, i32
  }
  func.func @transform_4(%arg0: i32) -> (i32, i32) {
    %c0_i32 = arith.constant 0 : i32
    %c0_i32_0 = arith.constant 0 : i32
    return %arg0, %c0_i32 : i32, i32
  }
}

</mosaic_0001>

<llo_original>
// kernel: tpu_custom_call.1
$region0: #{tpu_custom_call.1}
  #allocation0 [shape = 'u32[]', space=smem, size = 0x4, offset = 0x4, fixed_abs, tag = 'smem constant byte address 0x4 - core index']
  #allocation1 [shape = 'u32[72,128]{1,0:T(1,128)}', space=vmem, size = 0x9000, scoped, tag = 'internal scratch']
  %s0 = inlined_call_operand.hbm [shape: f32[16,32], index: 0, kind: input, shape index: {}]
  %s1 = inlined_call_operand.hbm [shape: f32[32,128], index: 1, kind: input, shape index: {}]
  %s2 = inlined_call_operand.vmem [shape: f32[1,128], index: 2, kind: input, shape index: {}]
  %s3 = inlined_call_operand.hbm [shape: f32[16,128], index: 3, kind: output, shape index: {0}]
  %s4 = inlined_call_operand.hbm [shape: s32[16,128], index: 4, kind: output, shape index: {1}]
  %5 = xla_tuple %s3, %s4
  %s6 = sld [smem:[#allocation0]]
  $region61: #{tpu_custom_call.1} parent=0
    _
  %s8 = ssub.s32 1, %s6
  %s9 = scalar_select 0, %s8, %s6
  $region1: #{tpu_custom_call.1} parent=0
    #allocation2 [shape = 'u8[8192]{0}', space=vmem, size = 0x2000, scoped, tag = 'input window, operand 0']
    #allocation3 [shape = 's32[2]{0}', space=sflag, size = 0x8, scoped, tag = 'scoped memory for tpu_custom_call.1']
    #allocation4 [shape = 's32[2]{0}', space=sflag, size = 0x8, scoped, tag = 'scoped memory for tpu_custom_call.1']
    #allocation5 [shape = 'u8[16384]{0}', space=vmem, size = 0x4000, scoped, tag = 'input window, operand 1, single buffered']
    #allocation6 [shape = 's32[1]{0}', space=sflag, size = 0x4, scoped, tag = 'scoped memory for tpu_custom_call.1']
    #allocation7 [shape = 'u8[8192]{0}', space=vmem, size = 0x2000, scoped, tag = 'output window, operand 0']
    #allocation8 [shape = 'u8[8192]{0}', space=vmem, size = 0x2000, scoped, tag = 'output window, operand 1']
    #allocation9 [shape = 's32[2]{0}', space=sflag, size = 0x8, scoped, tag = 'scoped memory for tpu_custom_call.1']
    %10 = vsyncpa [#allocation3], 0
    %s11 = scalar_lea.sflag [#allocation3], 1
    %12 = vsyncpa %s11, 0
    %13 = vsyncpa [#allocation6], 0
    %14 = vsyncpa [#allocation4], 0
    %s15 = scalar_lea.sflag [#allocation4], 1
    %16 = vsyncpa %s15, 0
    %17 = vsyncpa [#allocation9], 0
    %s18 = scalar_lea.sflag [#allocation9], 1
    %19 = vsyncpa %s18, 0
    loop: start=0, step=1, limit=4
    $region2: #{tpu_custom_call.1} parent=1 // loop_pre_header
      _
    $region3: #{tpu_custom_call.1} parent=1 // loop_header
      %s21 = sphi 0, %s25
      %p22 = scmp.ge.s32.totalorder %s21, 4
      %s31 = sphi 0, %s33
      %s34 = sphi 0, %s31
      %s35 = sphi 0, %s34
      %s51 = sphi 0, %s35
      %s55 = sphi 0, %s55
      %s57 = sphi 0, %s55
      %s58 = sphi 0, %s57
      %s72 = sphi 0, %s58
      %s76 = sphi 0, %s76
      %s78 = sphi 0, %s76
      %s79 = sphi 0, %s78
      %s93 = sphi 0, %s79
      %s99 = sphi 0, %s101
      %s102 = sphi 0, %s99
      %s103 = sphi 0, %s102
      %s119 = sphi 0, %s103
      %s125 = sphi 0, %s127
      %s128 = sphi 0, %s125
      %s129 = sphi 0, %s128
      %s145 = sphi 0, %s129
    $region4: #{tpu_custom_call.1} parent=1 // loop_header_branch
      %24 = sbr.rel (%p22) target = $region8
    $region5: #{tpu_custom_call.1} parent=1 // loop_body
      %s26 = ssub.s32 %s21, 1
      %s27 = ssub.s32 %s21, 2
      %s28 = sadd.s32 %s21, 1
      %s29 = ssub.s32 %s21, %s28
      %p30 = scmp.eq.s32.totalorder %s29, 0
      %s32 = sadd.s32 %s31, 1
      %s33 = scalar_select %p30, %s31, %s32
      %p36 = pneg %p30
      %p37 = scmp.eq.s32.totalorder %s21, 1
      %p38 = por %p36, %p37
      %p39 = scmp.ne.s32.totalorder %s31, %s34
      %p40 = scmp.eq.s32.totalorder %s21, 0
      %p41 = por %p39, %p40
      %p42 = scmp.ne.s32.totalorder %s31, %s34
      %p43 = scmp.eq.s32.totalorder %s26, 1
      %p44 = por %p42, %p43
      %p45 = scmp.ne.s32.totalorder %s34, %s35
      %p46 = scmp.eq.s32.totalorder %s26, 0
      %p47 = por %p45, %p46
      %p48 = scmp.ne.s32.totalorder %s34, %s35
      %p49 = scmp.eq.s32.totalorder %s27, 1
      %p50 = por %p48, %p49
      %p52 = scmp.ne.s32.totalorder %s35, %s51
      %p53 = scmp.eq.s32.totalorder %s27, 0
      %p54 = por %p52, %p53
      %s56 = sadd.s32 %s55, 1
      %p59 = scmp.eq.s32.totalorder %s21, 1
      %p60 = scmp.ne.s32.totalorder %s55, %s57
      %p61 = scmp.eq.s32.totalorder %s21, 0
      %p62 = por %p60, %p61
      %p63 = scmp.ne.s32.totalorder %s55, %s57
      %p64 = scmp.eq.s32.totalorder %s26, 1
      %p65 = por %p63, %p64
      %p66 = scmp.ne.s32.totalorder %s57, %s58
      %p67 = scmp.eq.s32.totalorder %s26, 0
      %p68 = por %p66, %p67
      %p69 = scmp.ne.s32.totalorder %s57, %s58
      %p70 = scmp.eq.s32.totalorder %s27, 1
      %p71 = por %p69, %p70
      %p73 = scmp.ne.s32.totalorder %s58, %s72
      %p74 = scmp.eq.s32.totalorder %s27, 0
      %p75 = por %p73, %p74
      %s77 = sadd.s32 %s76, 1
      %p80 = scmp.eq.s32.totalorder %s21, 1
      %p81 = scmp.ne.s32.totalorder %s76, %s78
      %p82 = scmp.eq.s32.totalorder %s21, 0
      %p83 = por %p81, %p82
      %p84 = scmp.ne.s32.totalorder %s76, %s78
      %p85 = scmp.eq.s32.totalorder %s26, 1
      %p86 = por %p84, %p85
      %p87 = scmp.ne.s32.totalorder %s78, %s79
      %p88 = scmp.eq.s32.totalorder %s26, 0
      %p89 = por %p87, %p88
      %p90 = scmp.ne.s32.totalorder %s78, %s79
      %p91 = scmp.eq.s32.totalorder %s27, 1
      %p92 = por %p90, %p91
      %p94 = scmp.ne.s32.totalorder %s79, %s93
      %p95 = scmp.eq.s32.totalorder %s27, 0
      %p96 = por %p94, %p95
      %s97 = ssub.s32 %s21, %s28
      %p98 = scmp.eq.s32.totalorder %s97, 0
      %s100 = sadd.s32 %s99, 1
      %s101 = scalar_select %p98, %s99, %s100
      %p104 = pneg %p98
      %p105 = scmp.eq.s32.totalorder %s21, 1
      %p106 = por %p104, %p105
      %p107 = scmp.ne.s32.totalorder %s99, %s102
      %p108 = scmp.eq.s32.totalorder %s21, 0
      %p109 = por %p107, %p108
      %p110 = scmp.ne.s32.totalorder %s99, %s102
      %p111 = scmp.eq.s32.totalorder %s26, 1
      %p112 = por %p110, %p111
      %p113 = scmp.ne.s32.totalorder %s102, %s103
      %p114 = scmp.eq.s32.totalorder %s26, 0
      %p115 = por %p113, %p114
      %p116 = scmp.ne.s32.totalorder %s102, %s103
      %p117 = scmp.eq.s32.totalorder %s27, 1
      %p118 = por %p116, %p117
      %p120 = scmp.ne.s32.totalorder %s103, %s119
      %p121 = scmp.eq.s32.totalorder %s27, 0
      %p122 = por %p120, %p121
      %s123 = ssub.s32 %s21, %s28
      %p124 = scmp.eq.s32.totalorder %s123, 0
      %s126 = sadd.s32 %s125, 1
      %s127 = scalar_select %p124, %s125, %s126
      %p130 = pneg %p124
      %p131 = scmp.eq.s32.totalorder %s21, 1
      %p132 = por %p130, %p131
      %p133 = scmp.ne.s32.totalorder %s125, %s128
      %p134 = scmp.eq.s32.totalorder %s21, 0
      %p135 = por %p133, %p134
      %p136 = scmp.ne.s32.totalorder %s125, %s128
      %p137 = scmp.eq.s32.totalorder %s26, 1
      %p138 = por %p136, %p137
      %p139 = scmp.ne.s32.totalorder %s128, %s129
      %p140 = scmp.eq.s32.totalorder %s26, 0
      %p141 = por %p139, %p140
      %p142 = scmp.ne.s32.totalorder %s128, %s129
      %p143 = scmp.eq.s32.totalorder %s27, 1
      %p144 = por %p142, %p143
      %p146 = scmp.ne.s32.totalorder %s129, %s145
      %p147 = scmp.eq.s32.totalorder %s27, 0
      %p148 = por %p146, %p147
      %p149 = scmp.le.s32.totalorder 1, %s21
      %p150 = scmp.lt.s32.totalorder %s21, 3
      %p151 = pnand %p149, %p150
      %p152 = pneg %p151
      // Predicated region
      $region9: #{tpu_custom_call.1} parent=5 // pred_check
        _
      $region10: #{tpu_custom_call.1} parent=5 // pred_check_branch
        %154 = sbr.rel (%p151) target = $region12
      $region11: #{tpu_custom_call.1} parent=5 // pred_region
        %s155 = ssub.s32 %s21, 1
        // Predicated region
        $region13: #{tpu_custom_call.1} parent=11 // pred_check
          %p156 = pneg %p68
        $region14: #{tpu_custom_call.1} parent=11 // pred_check_branch
          %158 = sbr.rel (%p156) target = $region16
        $region15: #{tpu_custom_call.1} parent=11 // pred_region
          %160 = vsyncadd [#allocation6], 0
          %s161 = sshll.u32 %s1, 4
          %s162 = int_to_ptr.hbm [resolvable:$true] %s161
          %s163 = sshll.u32 [#allocation5], 4
          %s164 = int_to_ptr.vmem [resolvable:$true] %s163
          %169 = dma.hbm_to_vmem [thread:$0]  %s162, 512, %s164, [#allocation6], 128, 128, 8
        $region16: #{tpu_custom_call.1} parent=11 // pred_fallthru
          _
        // Predicated region
        $region17: #{tpu_custom_call.1} parent=11 // pred_check
          %p170 = pneg %p89
        $region18: #{tpu_custom_call.1} parent=11 // pred_check_branch
          %172 = sbr.rel (%p170) target = $region20
        $region19: #{tpu_custom_call.1} parent=11 // pred_region
          _
        $region20: #{tpu_custom_call.1} parent=11 // pred_fallthru
          _
      $region12: #{tpu_custom_call.1} parent=5 // pred_fallthru
        _
      %p173 = scmp.lt.s32.totalorder %s21, 2
      // Predicated region
      $region21: #{tpu_custom_call.1} parent=5 // pred_check
        %p174 = pneg %p173
      $region22: #{tpu_custom_call.1} parent=5 // pred_check_branch
        %176 = sbr.rel (%p174) target = $region24
      $region23: #{tpu_custom_call.1} parent=5 // pred_region
        // Predicated region
        $region25: #{tpu_custom_call.1} parent=23 // pred_check
          %p177 = pneg %p41
        $region26: #{tpu_custom_call.1} parent=23 // pred_check_branch
          %179 = sbr.rel (%p177) target = $region28
        $region27: #{tpu_custom_call.1} parent=23 // pred_region
          %s180 = sand.u32 %s31, 1
          %s181 = scalar_lea.sflag [#allocation3], %s180
          %s182 = sand.u32 %s31, 1
          %s183 = smul.addr %s182, 8
          %s184 = scalar_lea.vmem [#allocation2], %s183
          %186 = vsyncadd %s181, 0
          %s187 = smul.addr %s21, 8
          %s188 = scalar_lea.hbm %s0, %s187
          %s190 = sshll.u32 %s188, 4
          %s191 = int_to_ptr.hbm [resolvable:$true] %s190
          %s192 = sshll.u32 %s184, 4
          %s193 = int_to_ptr.vmem [resolvable:$true] %s192
          %195 = dma.hbm_to_vmem [thread:$0]  %s191, 128, %s193, %s181
        $region28: #{tpu_custom_call.1} parent=23 // pred_fallthru
          _
      $region24: #{tpu_custom_call.1} parent=5 // pred_fallthru
        _
      %p196 = scmp.le.s32.totalorder 1, %s21
      %p197 = scmp.lt.s32.totalorder %s21, 3
      %p198 = pnand %p196, %p197
      %p199 = pneg %p198
      // Predicated region
      $region29: #{tpu_custom_call.1} parent=5 // pred_check
        _
      $region30: #{tpu_custom_call.1} parent=5 // pred_check_branch
        %201 = sbr.rel (%p198) target = $region32
      $region31: #{tpu_custom_call.1} parent=5 // pred_region
        %s202 = ssub.s32 %s21, 1
        %s203 = sand.u32 %s34, 1
        %s204 = scalar_lea.sflag [#allocation3], %s203
        %s205 = sand.u32 %s34, 1
        %s206 = smul.addr %s205, 8
        %s207 = scalar_lea.vmem [#allocation2], %s206
        // Predicated region
        $region33: #{tpu_custom_call.1} parent=31 // pred_check
          %p208 = pneg %p47
        $region34: #{tpu_custom_call.1} parent=31 // pred_check_branch
          %210 = sbr.rel (%p208) target = $region36
        $region35: #{tpu_custom_call.1} parent=31 // pred_region
          %212 = dma.done %s204, 128
        $region36: #{tpu_custom_call.1} parent=31 // pred_fallthru
          _
        // Predicated region
        $region37: #{tpu_custom_call.1} parent=31 // pred_check
          %p213 = pneg %p68
        $region38: #{tpu_custom_call.1} parent=31 // pred_check_branch
          %215 = sbr.rel (%p213) target = $region40
        $region39: #{tpu_custom_call.1} parent=31 // pred_region
          %217 = dma.done [#allocation6], 512
        $region40: #{tpu_custom_call.1} parent=31 // pred_fallthru
          _
        %s218 = sand.u32 %s34, 1
        %s219 = scalar_lea.sflag [#allocation3], %s218
        %s220 = sand.u32 %s34, 1
        %s221 = smul.addr %s220, 8
        %s222 = scalar_lea.vmem [#allocation2], %s221
        %p223 = pneg %p47
        %p224 = pneg %p44
        %p225 = pneg %p68
        %p226 = pneg %p65
        %p227 = pneg %p89
        %p228 = pneg %p86
        %p229 = pneg %p115
        %p230 = pneg %p112
        %s231 = sand.u32 %s102, 1
        %s232 = scalar_lea.sflag [#allocation4], %s231
        %s233 = sand.u32 %s102, 1
        %s234 = smul.addr %s233, 8
        %s235 = scalar_lea.vmem [#allocation7], %s234
        %p236 = pneg %p141
        %p237 = pneg %p138
        %s238 = sand.u32 %s128, 1
        %s239 = scalar_lea.sflag [#allocation9], %s238
        %s240 = sand.u32 %s128, 1
        %s241 = smul.addr %s240, 8
        %s242 = scalar_lea.vmem [#allocation8], %s241
        %v243 = vld [vmem:[%s207] sm:$0xff]
        %v244 = vld [vmem:[#allocation5] sm:$0xff]
        %v245 = vld [vmem:[#allocation5 + $0x8] sm:$0xff]
        %v246 = vld [vmem:[#allocation5 + $0x10] sm:$0xff]
        %v247 = vld [vmem:[#allocation5 + $0x18] sm:$0xff]
        %v248 = vld [vmem:[%s2] sm:$0x1]
        %v250 = vperm.slane %v248, 0
        %vm252 = vcmask 261120
        %v254 = vsel %vm252, %v243, 0
        %256 = vmatpush.msra.mxu0 0.0
        %257 = vmatpush.msra.mxu0 0.0
        %258 = vmatpush.msra.mxu0 0.0
        %259 = vmatpush.msra.mxu0 0.0
        %260 = vmatpush.msra.mxu0 0.0
        %261 = vmatpush.msra.mxu0 0.0
        %262 = vmatpush.msra.mxu0 0.0
        %263 = vmatpush.msra.mxu0 0.0
        %264 = vmatpush.msra.mxu0 0.0
        %265 = vmatpush.msra.mxu0 0.0
        %266 = vmatpush.msra.mxu0 0.0
        %267 = vmatpush.msra.mxu0 0.0
        %268 = vmatpush.msra.mxu0 %v247
        %269 = vmatpush.msra.mxu0 %v246
        %270 = vmatpush.msra.mxu0 %v245
        %271 = vmatpush.msra.mxu0 %v244
        %272 = vmatmul.f32.gmra.mxu0 %v254
        %v273 = vpop.f32.mrf.mxu0
        %v274 = vadd.f32 %v250, %v273
        %275 = vdwg.mxu0
        %v276 = vlaneseq
        %v277 = vand.u32 %v276, 127
        %278 = vmax.xlane.f32.xlu0 %v274
        %v279 = vpop.xlane.xlu0 %278
        %vm280 = vcmp.eq.f32.partialorder %v274, %v279
        %v281 = vsel %vm280, %v277, 128
        %v282 = vand.u32 %v281, 65535
        %v283 = vshra.s32 %v281, 16
        %v284 = vcvt.s32.f32 %v282
        %v285 = vcvt.s32.f32 %v283
        %286 = vmin.xlane.f32.xlu0 %v285
        %v287 = vpop.xlane.xlu0 %286
        %vm288 = vcmp.eq.f32.partialorder %v285, %v287
        %v289 = vsel %vm288, %v284, inf
        %290 = vmin.xlane.f32.xlu0 %v289
        %v291 = vpop.xlane.xlu0 %290
        %v292 = vcvt.f32.s32 %v291
        %v293 = vcvt.f32.s32 %v287
        %v294 = vshll.u32 %v293, 16
        %v295 = vadd.s32 %v294, %v292
        %vm296 = vcmp.eq.s32.totalorder %v277, %v295
        %v297 = vsel %vm296, -inf, %v274
        %vm298 = vcmp.eq.s32.totalorder %v277, 0
        %v299 = vsel %vm298, %v295, 0
        %300 = vmax.xlane.f32.xlu0 %v297
        %v301 = vpop.xlane.xlu0 %300
        %vm302 = vcmp.eq.f32.partialorder %v297, %v301
        %v303 = vsel %vm302, %v277, 128
        %v304 = vand.u32 %v303, 65535
        %v305 = vshra.s32 %v303, 16
        %v306 = vcvt.s32.f32 %v304
        %v307 = vcvt.s32.f32 %v305
        %308 = vmin.xlane.f32.xlu0 %v307
        %v309 = vpop.xlane.xlu0 %308
        %vm310 = vcmp.eq.f32.partialorder %v307, %v309
        %v311 = vsel %vm310, %v306, inf
        %312 = vmin.xlane.f32.xlu0 %v311
        %v313 = vpop.xlane.xlu0 %312
        %v314 = vcvt.f32.s32 %v313
        %v315 = vcvt.f32.s32 %v309
        %v316 = vshll.u32 %v315, 16
        %v317 = vadd.s32 %v316, %v314
        %vm318 = vcmp.eq.s32.totalorder %v277, %v317
        %vm319 = vmor %vm296, %vm318
        %vm320 = vcmp.eq.s32.totalorder %v277, 1
        %v321 = vsel %vm320, %v317, %v299
        %v322 = vsel %vm319, %v274, -inf
        %323 = vmax.xlane.f32.xlu0 %v322
        %v324 = vpop.xlane.xlu0 %323
        %v325 = vsub.f32 %v322, %v324
        %v326 = vmul.f32 %v325, 1.442695
        %v327 = vpow.pop %v326
        %v328 = vsel %vm319, %v327, 0.0
        %329 = vadd.xlane.f32.xlu0 %v328
        %v330 = vpop.xlane.xlu0 %329
        %v331 = vrcp.pop %v330
        %v332 = vmul.f32 %v328, %v331
        %333 = vst [vmem:[%s235] sm:$0xff] %v332
        %334 = vst [vmem:[%s242] sm:$0xff] %v321
        %s335 = sand.u32 %s102, 1
        %s336 = scalar_lea.sflag [#allocation4], %s335
        %s337 = sand.u32 %s102, 1
        %s338 = smul.addr %s337, 8
        %s339 = scalar_lea.vmem [#allocation7], %s338
        %s340 = sand.u32 %s128, 1
        %s341 = scalar_lea.sflag [#allocation9], %s340
        %s342 = sand.u32 %s128, 1
        %s343 = smul.addr %s342, 8
        %s344 = scalar_lea.vmem [#allocation8], %s343
        // Predicated region
        $region41: #{tpu_custom_call.1} parent=31 // pred_check
          %p345 = pneg %p112
        $region42: #{tpu_custom_call.1} parent=31 // pred_check_branch
          %347 = sbr.rel (%p345) target = $region44
        $region43: #{tpu_custom_call.1} parent=31 // pred_region
          %349 = vsyncadd %s336, 0
          %s350 = smul.addr %s26, 8
          %s351 = scalar_lea.hbm %s3, %s350
          %s353 = sshll.u32 %s339, 4
          %s354 = int_to_ptr.vmem [resolvable:$true] %s353
          %s355 = sshll.u32 %s351, 4
          %s356 = int_to_ptr.hbm [resolvable:$true] %s355
          %358 = dma.vmem_to_hbm [thread:$0]  %s354, 128, %s356, %s336
        $region44: #{tpu_custom_call.1} parent=31 // pred_fallthru
          _
        // Predicated region
        $region45: #{tpu_custom_call.1} parent=31 // pred_check
          %p359 = pneg %p138
        $region46: #{tpu_custom_call.1} parent=31 // pred_check_branch
          %361 = sbr.rel (%p359) target = $region48
        $region47: #{tpu_custom_call.1} parent=31 // pred_region
          %363 = vsyncadd %s341, 0
          %s364 = smul.addr %s26, 8
          %s365 = scalar_lea.hbm %s4, %s364
          %s367 = sshll.u32 %s344, 4
          %s368 = int_to_ptr.vmem [resolvable:$true] %s367
          %s369 = sshll.u32 %s365, 4
          %s370 = int_to_ptr.hbm [resolvable:$true] %s369
          %372 = dma.vmem_to_hbm [thread:$0]  %s368, 128, %s370, %s341
        $region48: #{tpu_custom_call.1} parent=31 // pred_fallthru
          _
      $region32: #{tpu_custom_call.1} parent=5 // pred_fallthru
        _
      %p373 = scmp.le.s32.totalorder 2, %s21
      // Predicated region
      $region49: #{tpu_custom_call.1} parent=5 // pred_check
        %p374 = pneg %p373
      $region50: #{tpu_custom_call.1} parent=5 // pred_check_branch
        %376 = sbr.rel (%p374) target = $region52
      $region51: #{tpu_custom_call.1} parent=5 // pred_region
        %s377 = ssub.s32 %s21, 2
        // Predicated region
        $region53: #{tpu_custom_call.1} parent=51 // pred_check
          %p378 = pneg %p118
        $region54: #{tpu_custom_call.1} parent=51 // pred_check_branch
          %380 = sbr.rel (%p378) target = $region56
        $region55: #{tpu_custom_call.1} parent=51 // pred_region
          %s381 = sand.u32 %s103, 1
          %s382 = scalar_lea.sflag [#allocation4], %s381
          %s383 = sand.u32 %s103, 1
          %s384 = smul.addr %s383, 8
          %s385 = scalar_lea.vmem [#allocation7], %s384
          %387 = dma.done %s382, 128
        $region56: #{tpu_custom_call.1} parent=51 // pred_fallthru
          _
        // Predicated region
        $region57: #{tpu_custom_call.1} parent=51 // pred_check
          %p388 = pneg %p144
        $region58: #{tpu_custom_call.1} parent=51 // pred_check_branch
          %390 = sbr.rel (%p388) target = $region60
        $region59: #{tpu_custom_call.1} parent=51 // pred_region
          %s391 = sand.u32 %s129, 1
          %s392 = scalar_lea.sflag [#allocation9], %s391
          %s393 = sand.u32 %s129, 1
          %s394 = smul.addr %s393, 8
          %s395 = scalar_lea.vmem [#allocation8], %s394
          %397 = dma.done %s392, 128
        $region60: #{tpu_custom_call.1} parent=51 // pred_fallthru
          _
      $region52: #{tpu_custom_call.1} parent=5 // pred_fallthru
        _
    $region6: #{tpu_custom_call.1} parent=1 // loop_footer
      %s25 = sadd.s32 1, %s21
    $region7: #{tpu_custom_call.1} parent=1 // loop_footer_branch
      %20 = sbr.rel target = $region3
    $region8: #{tpu_custom_call.1} parent=1 // loop_exit
      _
    %398 = vsyncpa [#allocation3], 1
    %s399 = scalar_lea.sflag [#allocation3], 1
    %400 = vsyncpa %s399, 1
    %401 = vsyncpa [#allocation6], 1
    %402 = vsyncpa [#allocation4], 1
    %s403 = scalar_lea.sflag [#allocation4], 1
    %404 = vsyncpa %s403, 1
    %405 = vsyncpa [#allocation9], 1
    %s406 = scalar_lea.sflag [#allocation9], 1
    %407 = vsyncpa %s406, 1

</llo_original>
